<compile_context>
chip_gen: v5e
topology: v5e:2x2
jax: 0.10.0
libtpu: 0.0.40
codegen_flags: <defaults>
</compile_context>

<pallas_src>
import jax
import jax.numpy as jnp
from jax.experimental import pallas as pl
from jax.experimental.pallas import tpu as pltpu


def mlp_sampler_kernel(x_ref, eps_ref, w1_ref, b1_ref, w2h_ref, w2e_ref,
                       b2_ref, w3_ref, b3_ref, out_ref):
    # x:   [TB, In]             eps: [TB*S, L]   (batch*samples flattened on host)
    # w1:  [In, H]   b1: [1, H]
    # w2h: [H, H]    w2e: [L, H]   b2: [1, H]
    # w3:  [O, H]    b3: [1, O]
    # out: [TB, S*O]             (lane-dense flat slab)
    TB, In = x_ref.shape
    R, L = eps_ref.shape
    S = R // TB
    H = w2h_ref.shape[0]
    O = b3_ref.shape[1]
    f32 = jnp.float32

    # ---- Linear(In, H) + ReLU (Dropout(0.0) == identity) --------------------
    if In == 1:
        # K=1 contraction: skip the MXU, VPU broadcast multiply instead.
        h1 = x_ref[...].astype(f32) * w1_ref[...].astype(f32)            # [TB, H]
    else:
        h1 = jnp.dot(x_ref[...], w1_ref[...], preferred_element_type=f32)
    h1 = jnp.maximum(h1 + b1_ref[...], 0.0)                              # [TB, H] f32

    # ---- EpsilonSampler + Linear(H+L, H) + ReLU ------------------------------
    # concat([features, eps], -1) @ W2  ==  features @ W2[:H] + eps @ W2[H:]
    # b2 is folded into the small per-batch term.
    t1 = jnp.dot(h1.astype(w2h_ref.dtype), w2h_ref[...],
                 preferred_element_type=f32) + b2_ref[...]               # [TB, H]
    t2 = jnp.dot(eps_ref[...], w2e_ref[...],
                 preferred_element_type=f32)                             # [TB*S, H]
    h2 = jnp.maximum(t1[:, None, :] + t2.reshape(TB, S, H), 0.0)         # [TB,S,H]

    # ---- output Linear(H, O) -------------------------------------------------
    if O == 1:
        # N=1 matmul wastes a full MXU pass: VPU multiply + lane reduction.
        w3v = w3_ref[...].astype(f32)                                    # [1, H]
        out = jnp.sum(h2 * w3v[:, None, :], axis=-1) + b3_ref[...]       # [TB, S]
    else:
        out = jax.lax.dot_general(
            h2.reshape(TB * S, H).astype(w3_ref.dtype), w3_ref[...],
            dimension_numbers=(((1,), (1,)), ((), ())),
            preferred_element_type=f32) + b3_ref[...]                    # [TB*S, O]
        out = out.reshape(TB, S * O)
    out_ref[...] = out.astype(out_ref.dtype)


def mlp_sampler_forward(x, eps, params, *, block_b=None, use_bf16=True):
    """MLPSampler forward. x: [B, In], eps: [B, S, L] -> [B, S, O] (float32)."""
    B, In = x.shape
    _, S, L = eps.shape
    H = params['w1'].shape[1]
    O = params['w3'].shape[1]

    if block_b is None:
        block_b = min(B, 128)          # tiny working set; fits all VMEM budgets
    n_blocks = pl.cdiv(B, block_b)
    Bp = n_blocks * block_b
    if Bp != B:                        # pad batch to a whole number of tiles
        x = jnp.pad(x, ((0, Bp - B), (0, 0)))
        eps = jnp.pad(eps, ((0, Bp - B), (0, 0), (0, 0)))

    mat_dt = jnp.bfloat16 if use_bf16 else jnp.float32
    xk = x.astype(mat_dt)
    eps_flat = eps.reshape(Bp * S, L).astype(mat_dt)   # host-side flatten is free
    w1 = params['w1'].astype(mat_dt)
    w2h = params['w2h'].astype(mat_dt)
    w2e = params['w2e'].astype(mat_dt)
    w3t = params['w3'].T.astype(mat_dt)                # [O, H]
    b1 = params['b1'].astype(jnp.float32)
    b2 = params['b2'].astype(jnp.float32)
    b3 = params['b3'].astype(jnp.float32)

    def resident(shape):               # weights/biases: same block every step
        return pl.BlockSpec(shape, lambda i: (0,) * len(shape))

    out_flat = pl.pallas_call(
        mlp_sampler_kernel,
        out_shape=jax.ShapeDtypeStruct((Bp, S * O), jnp.float32),
        grid=(n_blocks,),
        in_specs=[
            pl.BlockSpec((block_b, In), lambda i: (i, 0)),        # x tile
            pl.BlockSpec((block_b * S, L), lambda i: (i, 0)),     # eps rows tile
            resident(w1.shape), resident(b1.shape),
            resident(w2h.shape), resident(w2e.shape), resident(b2.shape),
            resident(w3t.shape), resident(b3.shape),
        ],
        out_specs=pl.BlockSpec((block_b, S * O), lambda i: (i, 0)),
        compiler_params=pltpu.CompilerParams(
            dimension_semantics=("parallel",),   # shard batch tiles across TCs
        ),
    )(xk, eps_flat, w1, b1, w2h, w2e, b2, w3t, b3)

    return out_flat[:B].reshape(B, S, O)


def init_params(key, input_size, hidden_size, latent_dim, output_size):
    """PyTorch-Linear-style init (uniform +-1/sqrt(fan_in)), weights as [in, out].
    The Linear over the concatenated [hidden + latent] features is split w2h/w2e."""
    ks = jax.random.split(key, 6)

    def unif(k, shape, fan_in):
        bound = 1.0 / jnp.sqrt(float(fan_in))
        return jax.random.uniform(k, shape, jnp.float32, -bound, bound)

    H, L, I, O = hidden_size, latent_dim, input_size, output_size
    w2_full = unif(ks[2], (H + L, H), H + L)
    return {
        'w1':  unif(ks[0], (I, H), I),
        'b1':  unif(ks[1], (1, H), I),
        'w2h': w2_full[:H, :],
        'w2e': w2_full[H:, :],
        'b2':  unif(ks[3], (1, H), H + L),
        'w3':  unif(ks[4], (H, O), H),
        'b3':  unif(ks[5], (1, O), H),
    }


def reference_forward(x, eps, p, mat_dtype=jnp.float32):
    """Pure-JAX spec reference. `mat_dtype` mirrors the dtype the kernel feeds
    the MXU with (operands rounded to mat_dtype, accumulation in f32)."""
    hi = jax.lax.Precision.HIGHEST
    q = lambda a: a.astype(mat_dtype).astype(jnp.float32)
    B, S = x.shape[0], eps.shape[1]
    h1 = jnp.maximum(jnp.dot(q(x), q(p['w1']), precision=hi) + p['b1'], 0.0)
    z = jnp.concatenate(
        [jnp.broadcast_to(h1[:, None, :], (B, S, h1.shape[1])), eps], axis=-1)
    w2 = jnp.concatenate([p['w2h'], p['w2e']], axis=0)
    h2 = jnp.maximum(
        jnp.einsum('bsf,fh->bsh', q(z), q(w2), precision=hi) + p['b2'], 0.0)
    return jnp.einsum('bsh,ho->bso', h2, q(p['w3']), precision=hi) + p['b3']


if __name__ == "__main__":
    # Module-consistent small shapes: input_size=1, hidden=64 (default),
    # latent_dim=16, output_size=1; batch=32, n_samples=8.
    B, IN, H, L, O, S = 32, 1, 64, 16, 1, 8

    key = jax.random.PRNGKey(0)
    k_x, k_eps, k_p = jax.random.split(key, 3)

    x = jax.random.normal(k_x, (B, IN), jnp.float32)
    # EpsilonSampler noise ~ N(0,1), generated outside the kernel.
    eps = jax.random.normal(k_eps, (B, S, L), jnp.float32)
    params = init_params(k_p, IN, H, L, O)

    # block_b=16 -> grid=(2,) so the tiled/pipelined path is exercised.
    out = mlp_sampler_forward(x, eps, params, block_b=16)
    out = jax.block_until_ready(out)
    assert out.shape == (B, S, O), out.shape

    # Tight check vs. a reference with the same bf16 MXU-operand rounding.
    ref_bf16 = reference_forward(x, eps, params, mat_dtype=jnp.bfloat16)
    assert jnp.allclose(out, ref_bf16, atol=5e-3, rtol=5e-3), "mismatch vs bf16 reference"

    # Loose sanity check vs. the pure-f32 module semantics.
    ref_f32 = reference_forward(x, eps, params)
    assert jnp.allclose(out, ref_f32, atol=0.25, rtol=0.1), "mismatch vs f32 reference"

    print("KERNEL_OK")
</pallas_src>

<mosaic_0001>
module attributes {stable_mosaic.version = 11 : i64} {
  func.func @mlp_sampler_kernel(%arg0: i32, %arg1: memref<16x1xbf16, #tpu.memory_space<vmem>>, %arg2: memref<128x16xbf16, #tpu.memory_space<vmem>>, %arg3: memref<1x64xbf16, #tpu.memory_space<vmem>>, %arg4: memref<1x64xf32, #tpu.memory_space<vmem>>, %arg5: memref<64x64xbf16, #tpu.memory_space<vmem>>, %arg6: memref<16x64xbf16, #tpu.memory_space<vmem>>, %arg7: memref<1x64xf32, #tpu.memory_space<vmem>>, %arg8: memref<1x64xbf16, #tpu.memory_space<vmem>>, %arg9: memref<1x1xf32, #tpu.memory_space<vmem>>, %arg10: memref<16x8xf32, #tpu.memory_space<vmem>>) attributes {dimension_semantics = [#tpu.dimension_semantics<parallel>], iteration_bounds = array<i64: 2>, scalar_prefetch = 0 : i64, scratch_operands = 0 : i64, tpu.core_type = #tpu.core_type<tc>, window_params = [{transform_indices = @transform_0, window_bounds = array<i64: 16, 1>}, {transform_indices = @transform_1, window_bounds = array<i64: 128, 16>}, {pipeline_mode = #tpu.pipeline_mode<synchronous>, transform_indices = @transform_2, window_bounds = array<i64: 1, 64>}, {pipeline_mode = #tpu.pipeline_mode<synchronous>, transform_indices = @transform_3, window_bounds = array<i64: 1, 64>}, {pipeline_mode = #tpu.pipeline_mode<synchronous>, transform_indices = @transform_4, window_bounds = array<i64: 64, 64>}, {pipeline_mode = #tpu.pipeline_mode<synchronous>, transform_indices = @transform_5, window_bounds = array<i64: 16, 64>}, {pipeline_mode = #tpu.pipeline_mode<synchronous>, transform_indices = @transform_6, window_bounds = array<i64: 1, 64>}, {pipeline_mode = #tpu.pipeline_mode<synchronous>, transform_indices = @transform_7, window_bounds = array<i64: 1, 64>}, {pipeline_mode = #tpu.pipeline_mode<synchronous>, transform_indices = @transform_8, window_bounds = array<i64: 1, 1>}, {transform_indices = @transform_9, window_bounds = array<i64: 16, 8>}]} {
    %c0 = arith.constant 0 : index
    %c0_0 = arith.constant 0 : index
    %0 = vector.load %arg1[%c0, %c0_0] : memref<16x1xbf16, #tpu.memory_space<vmem>>, vector<16x1xbf16>
    %1 = arith.extf %0 : vector<16x1xbf16> to vector<16x1xf32>
    %c0_1 = arith.constant 0 : index
    %c0_2 = arith.constant 0 : index
    %2 = vector.load %arg3[%c0_1, %c0_2] : memref<1x64xbf16, #tpu.memory_space<vmem>>, vector<1x64xbf16>
    %3 = arith.extf %2 : vector<1x64xbf16> to vector<1x64xf32>
    %4 = vector.broadcast %1 : vector<16x1xf32> to vector<16x64xf32>
    %5 = vector.broadcast %3 : vector<1x64xf32> to vector<16x64xf32>
    %6 = arith.mulf %4, %5 : vector<16x64xf32>
    %c0_3 = arith.constant 0 : index
    %c0_4 = arith.constant 0 : index
    %7 = vector.load %arg4[%c0_3, %c0_4] : memref<1x64xf32, #tpu.memory_space<vmem>>, vector<1x64xf32>
    %8 = vector.broadcast %7 : vector<1x64xf32> to vector<16x64xf32>
    %9 = arith.addf %6, %8 : vector<16x64xf32>
    %cst = arith.constant 0.000000e+00 : f32
    %10 = vector.broadcast %cst : f32 to vector<16x64xf32>
    %11 = arith.maximumf %9, %10 : vector<16x64xf32>
    %12 = arith.truncf %11 : vector<16x64xf32> to vector<16x64xbf16>
    %c0_5 = arith.constant 0 : index
    %c0_6 = arith.constant 0 : index
    %13 = vector.load %arg5[%c0_5, %c0_6] : memref<64x64xbf16, #tpu.memory_space<vmem>>, vector<64x64xbf16>
    %cst_7 = arith.constant dense<0.000000e+00> : vector<16x64xf32>
    %14 = tpu.matmul %12, %13, %cst_7 {dimension_numbers = #tpu.dot_dimension_numbers<[1], [0], [0], [1], [0, 0, 1, 1], [], []>} : vector<16x64xbf16>, vector<64x64xbf16>, vector<16x64xf32> -> vector<16x64xf32>
    %c0_8 = arith.constant 0 : index
    %c0_9 = arith.constant 0 : index
    %15 = vector.load %arg7[%c0_8, %c0_9] : memref<1x64xf32, #tpu.memory_space<vmem>>, vector<1x64xf32>
    %16 = vector.broadcast %15 : vector<1x64xf32> to vector<16x64xf32>
    %17 = arith.addf %14, %16 : vector<16x64xf32>
    %c0_10 = arith.constant 0 : index
    %c0_11 = arith.constant 0 : index
    %18 = vector.load %arg2[%c0_10, %c0_11] : memref<128x16xbf16, #tpu.memory_space<vmem>>, vector<128x16xbf16>
    %c0_12 = arith.constant 0 : index
    %c0_13 = arith.constant 0 : index
    %19 = vector.load %arg6[%c0_12, %c0_13] : memref<16x64xbf16, #tpu.memory_space<vmem>>, vector<16x64xbf16>
    %cst_14 = arith.constant dense<0.000000e+00> : vector<128x64xf32>
    %20 = tpu.matmul %18, %19, %cst_14 {dimension_numbers = #tpu.dot_dimension_numbers<[1], [0], [0], [1], [0, 0, 1, 1], [], []>} : vector<128x16xbf16>, vector<16x64xbf16>, vector<128x64xf32> -> vector<128x64xf32>
    %21 = vector.shape_cast %17 : vector<16x64xf32> to vector<16x1x64xf32>
    %22 = vector.shape_cast %20 : vector<128x64xf32> to vector<16x8x64xf32>
    %23 = vector.broadcast %21 : vector<16x1x64xf32> to vector<16x8x64xf32>
    %24 = arith.addf %23, %22 : vector<16x8x64xf32>
    %cst_15 = arith.constant 0.000000e+00 : f32
    %25 = vector.broadcast %cst_15 : f32 to vector<16x8x64xf32>
    %26 = arith.maximumf %24, %25 : vector<16x8x64xf32>
    %c0_16 = arith.constant 0 : index
    %c0_17 = arith.constant 0 : index
    %27 = vector.load %arg8[%c0_16, %c0_17] : memref<1x64xbf16, #tpu.memory_space<vmem>>, vector<1x64xbf16>
    %28 = arith.extf %27 : vector<1x64xbf16> to vector<1x64xf32>
    %29 = vector.shape_cast %28 : vector<1x64xf32> to vector<1x1x64xf32>
    %30 = vector.broadcast %29 : vector<1x1x64xf32> to vector<16x8x64xf32>
    %31 = arith.mulf %26, %30 : vector<16x8x64xf32>
    %cst_18 = arith.constant dense<0.000000e+00> : vector<16x8xf32>
    %32 = vector.multi_reduction <add>, %31, %cst_18 [2] : vector<16x8x64xf32> to vector<16x8xf32>
    %c0_19 = arith.constant 0 : index
    %c0_20 = arith.constant 0 : index
    %33 = vector.load %arg9[%c0_19, %c0_20] : memref<1x1xf32, #tpu.memory_space<vmem>>, vector<1x1xf32>
    %34 = vector.broadcast %33 : vector<1x1xf32> to vector<16x8xf32>
    %35 = arith.addf %32, %34 : vector<16x8xf32>
    %c0_21 = arith.constant 0 : index
    %c0_22 = arith.constant 0 : index
    %36 = vector.load %arg10[%c0_21, %c0_22] : memref<16x8xf32, #tpu.memory_space<vmem>>, vector<16x8xf32>
    tpu.vector_store %arg10[%c0_21, %c0_22], %35 {strides = array<i32>} : memref<16x8xf32, #tpu.memory_space<vmem>>, vector<16x8xf32>,
    return
  }
  func.func @transform_0(%arg0: i32) -> (i32, i32) {
    %c0_i32 = arith.constant 0 : i32
    %c0_i32_0 = arith.constant 0 : i32
    return %arg0, %c0_i32 : i32, i32
  }
  func.func @transform_1(%arg0: i32) -> (i32, i32) {
    %c0_i32 = arith.constant 0 : i32
    %c0_i32_0 = arith.constant 0 : i32
    return %arg0, %c0_i32 : i32, i32
  }
  func.func @transform_2(%arg0: i32) -> (i32, i32) {
    %c0_i32 = arith.constant 0 : i32
    %c0_i32_0 = arith.constant 0 : i32
    %c0_i32_1 = arith.constant 0 : i32
    return %c0_i32, %c0_i32_0 : i32, i32
  }
  func.func @transform_3(%arg0: i32) -> (i32, i32) {
    %c0_i32 = arith.constant 0 : i32
    %c0_i32_0 = arith.constant 0 : i32
    %c0_i32_1 = arith.constant 0 : i32
    return %c0_i32, %c0_i32_0 : i32, i32
  }
  func.func @transform_4(%arg0: i32) -> (i32, i32) {
    %c0_i32 = arith.constant 0 : i32
    %c0_i32_0 = arith.constant 0 : i32
    %c0_i32_1 = arith.constant 0 : i32
    return %c0_i32, %c0_i32_0 : i32, i32
  }
  func.func @transform_5(%arg0: i32) -> (i32, i32) {
    %c0_i32 = arith.constant 0 : i32
    %c0_i32_0 = arith.constant 0 : i32
    %c0_i32_1 = arith.constant 0 : i32
    return %c0_i32, %c0_i32_0 : i32, i32
  }
  func.func @transform_6(%arg0: i32) -> (i32, i32) {
    %c0_i32 = arith.constant 0 : i32
    %c0_i32_0 = arith.constant 0 : i32
    %c0_i32_1 = arith.constant 0 : i32
    return %c0_i32, %c0_i32_0 : i32, i32
  }
  func.func @transform_7(%arg0: i32) -> (i32, i32) {
    %c0_i32 = arith.constant 0 : i32
    %c0_i32_0 = arith.constant 0 : i32
    %c0_i32_1 = arith.constant 0 : i32
    return %c0_i32, %c0_i32_0 : i32, i32
  }
  func.func @transform_8(%arg0: i32) -> (i32, i32) {
    %c0_i32 = arith.constant 0 : i32
    %c0_i32_0 = arith.constant 0 : i32
    %c0_i32_1 = arith.constant 0 : i32
    return %c0_i32, %c0_i32_0 : i32, i32
  }
  func.func @transform_9(%arg0: i32) -> (i32, i32) {
    %c0_i32 = arith.constant 0 : i32
    %c0_i32_0 = arith.constant 0 : i32
    return %arg0, %c0_i32 : i32, i32
  }
}

</mosaic_0001>

<llo_original>
// kernel: tpu_custom_call.1
$region0: #{tpu_custom_call.1}
  #allocation0 [shape = 'u32[]', space=smem, size = 0x4, offset = 0x4, fixed_abs, tag = 'smem constant byte address 0x4 - core index']
  #allocation1 [shape = 'u32[72,128]{1,0:T(1,128)}', space=vmem, size = 0x9000, scoped, tag = 'internal scratch']
  #allocation2 [shape = 'f32[1,1]{1,0:T(1,128)S(1)}', space=vmem, size = 0x200, scoped, tag = 'scoped memory for tpu_custom_call.1']
  %s0 = inlined_call_operand.vmem [shape: bf16[32,1], index: 0, kind: input, shape index: {}]
  %s1 = inlined_call_operand.vmem [shape: bf16[256,16], index: 1, kind: input, shape index: {}]
  %s2 = inlined_call_operand.vmem [shape: bf16[1,64], index: 2, kind: input, shape index: {}]
  %s3 = inlined_call_operand.vmem [shape: f32[1,64], index: 3, kind: input, shape index: {}]
  %s4 = inlined_call_operand.vmem [shape: bf16[64,64], index: 4, kind: input, shape index: {}]
  %s5 = inlined_call_operand.vmem [shape: bf16[16,64], index: 5, kind: input, shape index: {}]
  %s6 = inlined_call_operand.vmem [shape: f32[1,64], index: 6, kind: input, shape index: {}]
  %s7 = inlined_call_operand.vmem [shape: bf16[1,64], index: 7, kind: input, shape index: {}]
  %s8 = inlined_call_operand.<no memory space> [shape: f32[1,1], index: 8, kind: input, shape index: {}]
  %s9 = inlined_call_operand.vmem [shape: f32[32,8], index: 9, kind: output, shape index: {}]
  %s10 = sld [smem:[#allocation0]]
  $region69: #{tpu_custom_call.1} parent=0
    _
  %s12 = ssub.s32 1, %s10
  %s13 = scalar_select 0, %s12, %s10
  %v14 = vstv %s8
  %15 = vst [vmem:[#allocation2] sm:$0x1] %v14
  loop: start=0, step=1, limit=4
  $region2: #{tpu_custom_call.1} parent=0 // loop_pre_header
    _
  $region3: #{tpu_custom_call.1} parent=0 // loop_header
    %s17 = sphi 0, %s21
    %p18 = scmp.ge.s32.totalorder %s17, 4
    %s27 = sphi 0, %s29
    %s30 = sphi 0, %s27
    %s31 = sphi 0, %s30
    %s47 = sphi 0, %s31
    %s53 = sphi 0, %s55
    %s56 = sphi 0, %s53
    %s57 = sphi 0, %s56
    %s73 = sphi 0, %s57
    %s77 = sphi 0, %s77
    %s79 = sphi 0, %s77
    %s80 = sphi 0, %s79
    %s94 = sphi 0, %s80
    %s98 = sphi 0, %s98
    %s100 = sphi 0, %s98
    %s101 = sphi 0, %s100
    %s115 = sphi 0, %s101
    %s119 = sphi 0, %s119
    %s121 = sphi 0, %s119
    %s122 = sphi 0, %s121
    %s136 = sphi 0, %s122
    %s140 = sphi 0, %s140
    %s142 = sphi 0, %s140
    %s143 = sphi 0, %s142
    %s157 = sphi 0, %s143
    %s161 = sphi 0, %s161
    %s163 = sphi 0, %s161
    %s164 = sphi 0, %s163
    %s178 = sphi 0, %s164
    %s182 = sphi 0, %s182
    %s184 = sphi 0, %s182
    %s185 = sphi 0, %s184
    %s199 = sphi 0, %s185
    %s203 = sphi 0, %s203
    %s205 = sphi 0, %s203
    %s206 = sphi 0, %s205
    %s220 = sphi 0, %s206
    %s226 = sphi 0, %s228
    %s229 = sphi 0, %s226
    %s230 = sphi 0, %s229
    %s246 = sphi 0, %s230
  $region4: #{tpu_custom_call.1} parent=0 // loop_header_branch
    %20 = sbr.rel (%p18) target = $region8
  $region5: #{tpu_custom_call.1} parent=0 // loop_body
    %s22 = ssub.s32 %s17, 1
    %s23 = ssub.s32 %s17, 2
    %s24 = sadd.s32 %s17, 1
    %s25 = ssub.s32 %s17, %s24
    %p26 = scmp.eq.s32.totalorder %s25, 0
    %s28 = sadd.s32 %s27, 1
    %s29 = scalar_select %p26, %s27, %s28
    %p32 = pneg %p26
    %p33 = scmp.eq.s32.totalorder %s17, 1
    %p34 = por %p32, %p33
    %p35 = scmp.ne.s32.totalorder %s27, %s30
    %p36 = scmp.eq.s32.totalorder %s17, 0
    %p37 = por %p35, %p36
    %p38 = scmp.ne.s32.totalorder %s27, %s30
    %p39 = scmp.eq.s32.totalorder %s22, 1
    %p40 = por %p38, %p39
    %p41 = scmp.ne.s32.totalorder %s30, %s31
    %p42 = scmp.eq.s32.totalorder %s22, 0
    %p43 = por %p41, %p42
    %p44 = scmp.ne.s32.totalorder %s30, %s31
    %p45 = scmp.eq.s32.totalorder %s23, 1
    %p46 = por %p44, %p45
    %p48 = scmp.ne.s32.totalorder %s31, %s47
    %p49 = scmp.eq.s32.totalorder %s23, 0
    %p50 = por %p48, %p49
    %s51 = ssub.s32 %s17, %s24
    %p52 = scmp.eq.s32.totalorder %s51, 0
    %s54 = sadd.s32 %s53, 1
    %s55 = scalar_select %p52, %s53, %s54
    %p58 = pneg %p52
    %p59 = scmp.eq.s32.totalorder %s17, 1
    %p60 = por %p58, %p59
    %p61 = scmp.ne.s32.totalorder %s53, %s56
    %p62 = scmp.eq.s32.totalorder %s17, 0
    %p63 = por %p61, %p62
    %p64 = scmp.ne.s32.totalorder %s53, %s56
    %p65 = scmp.eq.s32.totalorder %s22, 1
    %p66 = por %p64, %p65
    %p67 = scmp.ne.s32.totalorder %s56, %s57
    %p68 = scmp.eq.s32.totalorder %s22, 0
    %p69 = por %p67, %p68
    %p70 = scmp.ne.s32.totalorder %s56, %s57
    %p71 = scmp.eq.s32.totalorder %s23, 1
    %p72 = por %p70, %p71
    %p74 = scmp.ne.s32.totalorder %s57, %s73
    %p75 = scmp.eq.s32.totalorder %s23, 0
    %p76 = por %p74, %p75
    %s78 = sadd.s32 %s77, 1
    %p81 = scmp.eq.s32.totalorder %s17, 1
    %p82 = scmp.ne.s32.totalorder %s77, %s79
    %p83 = scmp.eq.s32.totalorder %s17, 0
    %p84 = por %p82, %p83
    %p85 = scmp.ne.s32.totalorder %s77, %s79
    %p86 = scmp.eq.s32.totalorder %s22, 1
    %p87 = por %p85, %p86
    %p88 = scmp.ne.s32.totalorder %s79, %s80
    %p89 = scmp.eq.s32.totalorder %s22, 0
    %p90 = por %p88, %p89
    %p91 = scmp.ne.s32.totalorder %s79, %s80
    %p92 = scmp.eq.s32.totalorder %s23, 1
    %p93 = por %p91, %p92
    %p95 = scmp.ne.s32.totalorder %s80, %s94
    %p96 = scmp.eq.s32.totalorder %s23, 0
    %p97 = por %p95, %p96
    %s99 = sadd.s32 %s98, 1
    %p102 = scmp.eq.s32.totalorder %s17, 1
    %p103 = scmp.ne.s32.totalorder %s98, %s100
    %p104 = scmp.eq.s32.totalorder %s17, 0
    %p105 = por %p103, %p104
    %p106 = scmp.ne.s32.totalorder %s98, %s100
    %p107 = scmp.eq.s32.totalorder %s22, 1
    %p108 = por %p106, %p107
    %p109 = scmp.ne.s32.totalorder %s100, %s101
    %p110 = scmp.eq.s32.totalorder %s22, 0
    %p111 = por %p109, %p110
    %p112 = scmp.ne.s32.totalorder %s100, %s101
    %p113 = scmp.eq.s32.totalorder %s23, 1
    %p114 = por %p112, %p113
    %p116 = scmp.ne.s32.totalorder %s101, %s115
    %p117 = scmp.eq.s32.totalorder %s23, 0
    %p118 = por %p116, %p117
    %s120 = sadd.s32 %s119, 1
    %p123 = scmp.eq.s32.totalorder %s17, 1
    %p124 = scmp.ne.s32.totalorder %s119, %s121
    %p125 = scmp.eq.s32.totalorder %s17, 0
    %p126 = por %p124, %p125
    %p127 = scmp.ne.s32.totalorder %s119, %s121
    %p128 = scmp.eq.s32.totalorder %s22, 1
    %p129 = por %p127, %p128
    %p130 = scmp.ne.s32.totalorder %s121, %s122
    %p131 = scmp.eq.s32.totalorder %s22, 0
    %p132 = por %p130, %p131
    %p133 = scmp.ne.s32.totalorder %s121, %s122
    %p134 = scmp.eq.s32.totalorder %s23, 1
    %p135 = por %p133, %p134
    %p137 = scmp.ne.s32.totalorder %s122, %s136
    %p138 = scmp.eq.s32.totalorder %s23, 0
    %p139 = por %p137, %p138
    %s141 = sadd.s32 %s140, 1
    %p144 = scmp.eq.s32.totalorder %s17, 1
    %p145 = scmp.ne.s32.totalorder %s140, %s142
    %p146 = scmp.eq.s32.totalorder %s17, 0
    %p147 = por %p145, %p146
    %p148 = scmp.ne.s32.totalorder %s140, %s142
    %p149 = scmp.eq.s32.totalorder %s22, 1
    %p150 = por %p148, %p149
    %p151 = scmp.ne.s32.totalorder %s142, %s143
    %p152 = scmp.eq.s32.totalorder %s22, 0
    %p153 = por %p151, %p152
    %p154 = scmp.ne.s32.totalorder %s142, %s143
    %p155 = scmp.eq.s32.totalorder %s23, 1
    %p156 = por %p154, %p155
    %p158 = scmp.ne.s32.totalorder %s143, %s157
    %p159 = scmp.eq.s32.totalorder %s23, 0
    %p160 = por %p158, %p159
    %s162 = sadd.s32 %s161, 1
    %p165 = scmp.eq.s32.totalorder %s17, 1
    %p166 = scmp.ne.s32.totalorder %s161, %s163
    %p167 = scmp.eq.s32.totalorder %s17, 0
    %p168 = por %p166, %p167
    %p169 = scmp.ne.s32.totalorder %s161, %s163
    %p170 = scmp.eq.s32.totalorder %s22, 1
    %p171 = por %p169, %p170
    %p172 = scmp.ne.s32.totalorder %s163, %s164
    %p173 = scmp.eq.s32.totalorder %s22, 0
    %p174 = por %p172, %p173
    %p175 = scmp.ne.s32.totalorder %s163, %s164
    %p176 = scmp.eq.s32.totalorder %s23, 1
    %p177 = por %p175, %p176
    %p179 = scmp.ne.s32.totalorder %s164, %s178
    %p180 = scmp.eq.s32.totalorder %s23, 0
    %p181 = por %p179, %p180
    %s183 = sadd.s32 %s182, 1
    %p186 = scmp.eq.s32.totalorder %s17, 1
    %p187 = scmp.ne.s32.totalorder %s182, %s184
    %p188 = scmp.eq.s32.totalorder %s17, 0
    %p189 = por %p187, %p188
    %p190 = scmp.ne.s32.totalorder %s182, %s184
    %p191 = scmp.eq.s32.totalorder %s22, 1
    %p192 = por %p190, %p191
    %p193 = scmp.ne.s32.totalorder %s184, %s185
    %p194 = scmp.eq.s32.totalorder %s22, 0
    %p195 = por %p193, %p194
    %p196 = scmp.ne.s32.totalorder %s184, %s185
    %p197 = scmp.eq.s32.totalorder %s23, 1
    %p198 = por %p196, %p197
    %p200 = scmp.ne.s32.totalorder %s185, %s199
    %p201 = scmp.eq.s32.totalorder %s23, 0
    %p202 = por %p200, %p201
    %s204 = sadd.s32 %s203, 1
    %p207 = scmp.eq.s32.totalorder %s17, 1
    %p208 = scmp.ne.s32.totalorder %s203, %s205
    %p209 = scmp.eq.s32.totalorder %s17, 0
    %p210 = por %p208, %p209
    %p211 = scmp.ne.s32.totalorder %s203, %s205
    %p212 = scmp.eq.s32.totalorder %s22, 1
    %p213 = por %p211, %p212
    %p214 = scmp.ne.s32.totalorder %s205, %s206
    %p215 = scmp.eq.s32.totalorder %s22, 0
    %p216 = por %p214, %p215
    %p217 = scmp.ne.s32.totalorder %s205, %s206
    %p218 = scmp.eq.s32.totalorder %s23, 1
    %p219 = por %p217, %p218
    %p221 = scmp.ne.s32.totalorder %s206, %s220
    %p222 = scmp.eq.s32.totalorder %s23, 0
    %p223 = por %p221, %p222
    %s224 = ssub.s32 %s17, %s24
    %p225 = scmp.eq.s32.totalorder %s224, 0
    %s227 = sadd.s32 %s226, 1
    %s228 = scalar_select %p225, %s226, %s227
    %p231 = pneg %p225
    %p232 = scmp.eq.s32.totalorder %s17, 1
    %p233 = por %p231, %p232
    %p234 = scmp.ne.s32.totalorder %s226, %s229
    %p235 = scmp.eq.s32.totalorder %s17, 0
    %p236 = por %p234, %p235
    %p237 = scmp.ne.s32.totalorder %s226, %s229
    %p238 = scmp.eq.s32.totalorder %s22, 1
    %p239 = por %p237, %p238
    %p240 = scmp.ne.s32.totalorder %s229, %s230
    %p241 = scmp.eq.s32.totalorder %s22, 0
    %p242 = por %p240, %p241
    %p243 = scmp.ne.s32.totalorder %s229, %s230
    %p244 = scmp.eq.s32.totalorder %s23, 1
    %p245 = por %p243, %p244
    %p247 = scmp.ne.s32.totalorder %s230, %s246
    %p248 = scmp.eq.s32.totalorder %s23, 0
    %p249 = por %p247, %p248
    %p250 = scmp.le.s32.totalorder 1, %s17
    %p251 = scmp.lt.s32.totalorder %s17, 3
    %p252 = pnand %p250, %p251
    %p253 = pneg %p252
    // Predicated region
    $region9: #{tpu_custom_call.1} parent=5 // pred_check
      _
    $region10: #{tpu_custom_call.1} parent=5 // pred_check_branch
      %255 = sbr.rel (%p252) target = $region12
    $region11: #{tpu_custom_call.1} parent=5 // pred_region
      %s256 = ssub.s32 %s17, 1
      // Predicated region
      $region13: #{tpu_custom_call.1} parent=11 // pred_check
        %p257 = pneg %p90
      $region14: #{tpu_custom_call.1} parent=11 // pred_check_branch
        %259 = sbr.rel (%p257) target = $region16
      $region15: #{tpu_custom_call.1} parent=11 // pred_region
        _
      $region16: #{tpu_custom_call.1} parent=11 // pred_fallthru
        _
      // Predicated region
      $region17: #{tpu_custom_call.1} parent=11 // pred_check
        %p260 = pneg %p111
      $region18: #{tpu_custom_call.1} parent=11 // pred_check_branch
        %262 = sbr.rel (%p260) target = $region20
      $region19: #{tpu_custom_call.1} parent=11 // pred_region
        _
      $region20: #{tpu_custom_call.1} parent=11 // pred_fallthru
        _
      // Predicated region
      $region21: #{tpu_custom_call.1} parent=11 // pred_check
        %p263 = pneg %p132
      $region22: #{tpu_custom_call.1} parent=11 // pred_check_branch
        %265 = sbr.rel (%p263) target = $region24
      $region23: #{tpu_custom_call.1} parent=11 // pred_region
        _
      $region24: #{tpu_custom_call.1} parent=11 // pred_fallthru
        _
      // Predicated region
      $region25: #{tpu_custom_call.1} parent=11 // pred_check
        %p266 = pneg %p153
      $region26: #{tpu_custom_call.1} parent=11 // pred_check_branch
        %268 = sbr.rel (%p266) target = $region28
      $region27: #{tpu_custom_call.1} parent=11 // pred_region
        _
      $region28: #{tpu_custom_call.1} parent=11 // pred_fallthru
        _
      // Predicated region
      $region29: #{tpu_custom_call.1} parent=11 // pred_check
        %p269 = pneg %p174
      $region30: #{tpu_custom_call.1} parent=11 // pred_check_branch
        %271 = sbr.rel (%p269) target = $region32
      $region31: #{tpu_custom_call.1} parent=11 // pred_region
        _
      $region32: #{tpu_custom_call.1} parent=11 // pred_fallthru
        _
      // Predicated region
      $region33: #{tpu_custom_call.1} parent=11 // pred_check
        %p272 = pneg %p195
      $region34: #{tpu_custom_call.1} parent=11 // pred_check_branch
        %274 = sbr.rel (%p272) target = $region36
      $region35: #{tpu_custom_call.1} parent=11 // pred_region
        _
      $region36: #{tpu_custom_call.1} parent=11 // pred_fallthru
        _
      // Predicated region
      $region37: #{tpu_custom_call.1} parent=11 // pred_check
        %p275 = pneg %p216
      $region38: #{tpu_custom_call.1} parent=11 // pred_check_branch
        %277 = sbr.rel (%p275) target = $region40
      $region39: #{tpu_custom_call.1} parent=11 // pred_region
        _
      $region40: #{tpu_custom_call.1} parent=11 // pred_fallthru
        _
    $region12: #{tpu_custom_call.1} parent=5 // pred_fallthru
      _
    %p278 = scmp.lt.s32.totalorder %s17, 2
    // Predicated region
    $region41: #{tpu_custom_call.1} parent=5 // pred_check
      %p279 = pneg %p278
    $region42: #{tpu_custom_call.1} parent=5 // pred_check_branch
      %281 = sbr.rel (%p279) target = $region44
    $region43: #{tpu_custom_call.1} parent=5 // pred_region
      // Predicated region
      $region45: #{tpu_custom_call.1} parent=43 // pred_check
        %p282 = pneg %p37
      $region46: #{tpu_custom_call.1} parent=43 // pred_check_branch
        %284 = sbr.rel (%p282) target = $region48
      $region47: #{tpu_custom_call.1} parent=43 // pred_region
        %s285 = smul.u32 2, %s17
        %p286 = scmp.lt.s32.totalorder %s285, 3
        %s287 = scalar_select %p286, %s285, 3
        %s288 = smul.addr %s287, 4
        %s289 = scalar_lea.vmem %s0, %s288
        %s290 = smul.u32 2, %s17
      $region48: #{tpu_custom_call.1} parent=43 // pred_fallthru
        _
      // Predicated region
      $region49: #{tpu_custom_call.1} parent=43 // pred_check
        %p291 = pneg %p63
      $region50: #{tpu_custom_call.1} parent=43 // pred_check_branch
        %293 = sbr.rel (%p291) target = $region52
      $region51: #{tpu_custom_call.1} parent=43 // pred_region
        %s294 = smul.u32 16, %s17
        %p295 = scmp.lt.s32.totalorder %s294, 31
        %s296 = scalar_select %p295, %s294, 31
        %s297 = smul.addr %s296, 4
        %s298 = scalar_lea.vmem %s1, %s297
        %s299 = smul.u32 16, %s17
      $region52: #{tpu_custom_call.1} parent=43 // pred_fallthru
        _
    $region44: #{tpu_custom_call.1} parent=5 // pred_fallthru
      _
    %p300 = scmp.le.s32.totalorder 1, %s17
    %p301 = scmp.lt.s32.totalorder %s17, 3
    %p302 = pnand %p300, %p301
    %p303 = pneg %p302
    // Predicated region
    $region53: #{tpu_custom_call.1} parent=5 // pred_check
      _
    $region54: #{tpu_custom_call.1} parent=5 // pred_check_branch
      %305 = sbr.rel (%p302) target = $region56
    $region55: #{tpu_custom_call.1} parent=5 // pred_region
      %s306 = ssub.s32 %s17, 1
      %s307 = smul.u32 2, %s22
      %p308 = scmp.lt.s32.totalorder %s307, 3
      %s309 = scalar_select %p308, %s307, 3
      %s310 = smul.addr %s309, 4
      %s311 = scalar_lea.vmem %s0, %s310
      %p312 = pneg %p43
      %p313 = pneg %p40
      %s314 = smul.u32 16, %s22
      %p315 = scmp.lt.s32.totalorder %s314, 31
      %s316 = scalar_select %p315, %s314, 31
      %s317 = smul.addr %s316, 4
      %s318 = scalar_lea.vmem %s1, %s317
      %p319 = pneg %p69
      %p320 = pneg %p66
      %p321 = pneg %p90
      %p322 = pneg %p87
      %p323 = pneg %p111
      %p324 = pneg %p108
      %p325 = pneg %p132
      %p326 = pneg %p129
      %p327 = pneg %p153
      %p328 = pneg %p150
      %p329 = pneg %p174
      %p330 = pneg %p171
      %p331 = pneg %p195
      %p332 = pneg %p192
      %p333 = pneg %p216
      %p334 = pneg %p213
      %p335 = pneg %p242
      %p336 = pneg %p239
      %s337 = smul.u32 2, %s22
      %p338 = scmp.lt.s32.totalorder %s337, 3
      %s339 = scalar_select %p338, %s337, 3
      %s340 = smul.addr %s339, 8
      %s341 = scalar_lea.vmem %s9, %s340
      %s342 = smul.u32 2, %s22
      %p343 = scmp.lt.s32.totalorder %s342, 3
      %s344 = scalar_select %p343, %s342, 3
      %s345 = smul.addr %s344, 4
      %s346 = scalar_lea.vmem %s0, %s345
      %s347 = smul.u32 2, %s22
      %s348 = smul.u32 16, %s22
      %p349 = scmp.lt.s32.totalorder %s348, 31
      %s350 = scalar_select %p349, %s348, 31
      %s351 = smul.addr %s350, 4
      %s352 = scalar_lea.vmem %s1, %s351
      %s353 = smul.u32 16, %s22
      %s354 = smul.u32 2, %s22
      %p355 = scmp.lt.s32.totalorder %s354, 3
      %s356 = scalar_select %p355, %s354, 3
      %s357 = smul.addr %s356, 8
      %s358 = scalar_lea.vmem %s9, %s357
      %s359 = smul.u32 2, %s22
      %v361 = vld [vmem:[%s346] sm:$0xf]
      %v362 = vld [vmem:[%s346 + $0x4] sm:$0xf]
      %v363 = vunpack.c.l.bf16 %v361
      %v364 = vunpack.c.l.bf16 %v362
      %v365 = vld [vmem:[%s2] sm:$0x1]
      %v366 = vunpack.c.l.bf16 %v365
      %368 = vset.pattern.permute.xlu0 0
      %369 = vperm.xlu0 %368, %v363
      %v370 = vpop.permute.xlu0 %369
      %373 = vset.pattern.permute.xlu0 0
      %374 = vperm.xlu0 %373, %v364
      %v375 = vpop.permute.xlu0 %374
      %v377 = vperm.slane %v366, 0
      %v378 = vmul.f32 %v370, %v377
      %v379 = vmul.f32 %v375, %v377
      %v380 = vld [vmem:[%s3] sm:$0x1]
      %v382 = vperm.slane %v380, 0
      %v384 = vadd.f32 %v378, %v382
      %v385 = vadd.f32 %v379, %v382
      %v386 = vmax.f32 %v384, 0.0
      %v387 = vmax.f32 %v385, 0.0
      %v388 = vpack.c.bf16 %v387, %v386
      %v389 = vld [vmem:[%s4] sm:$0xf]
      %v390 = vld [vmem:[%s4 + $0x4] sm:$0xf]
      %v391 = vld [vmem:[%s4 + $0x8] sm:$0xf]
      %v392 = vld [vmem:[%s4 + $0xc] sm:$0xf]
      %v393 = vld [vmem:[%s4 + $0x10] sm:$0xf]
      %v394 = vld [vmem:[%s4 + $0x14] sm:$0xf]
      %v395 = vld [vmem:[%s4 + $0x18] sm:$0xf]
      %v396 = vld [vmem:[%s4 + $0x1c] sm:$0xf]
      %v397 = vld [vmem:[%s6] sm:$0x1]
      %v399 = vperm.slane %v397, 0
      %v409 = vunpack.c.l.b16 %v389
      %v410 = vunpack.c.l.b16 %v390
      %v411 = vunpack.c.l.b16 %v391
      %v412 = vunpack.c.l.b16 %v392
      %v413 = vunpack.c.l.b16 %v393
      %v414 = vunpack.c.l.b16 %v394
      %v415 = vunpack.c.l.b16 %v395
      %v416 = vunpack.c.l.b16 %v396
      %v417 = vpack.c.b16 %v410, %v409
      %v418 = vpack.c.b16 %v412, %v411
      %v419 = vpack.c.b16 %v414, %v413
      %v420 = vpack.c.b16 %v416, %v415
      %vm425 = vcmask 523264
      %v427 = vsel %vm425, %v388, 0
      %429 = vmatpush.bf16.msra.mxu0 0
      %430 = vmatpush.bf16.msra.mxu0 0
      %431 = vmatpush.bf16.msra.mxu0 0
      %432 = vmatpush.bf16.msra.mxu0 0
      %433 = vmatpush.bf16.msra.mxu0 %v420
      %434 = vmatpush.bf16.msra.mxu0 %v419
      %435 = vmatpush.bf16.msra.mxu0 %v418
      %436 = vmatpush.bf16.msra.mxu0 %v417
      %437 = vmatmul.bf16.gmra.mxu0 %v427
      %v438 = vpop.f32.mrf.mxu0
      %v439 = vadd.f32 %v399, %v438
      %v440 = vpop.f32.mrf.mxu0
      %v441 = vadd.f32 %v399, %v440
      %442 = vdwg.mxu0
      %v443 = vld [vmem:[%s352] sm:$0xf]
      %v444 = vld [vmem:[%s352 + $0x4] sm:$0xf]
      %v445 = vld [vmem:[%s352 + $0x8] sm:$0xf]
      %v446 = vld [vmem:[%s352 + $0xc] sm:$0xf]
      %v447 = vld [vmem:[%s352 + $0x10] sm:$0xf]
      %v448 = vld [vmem:[%s352 + $0x14] sm:$0xf]
      %v449 = vld [vmem:[%s352 + $0x18] sm:$0xf]
      %v450 = vld [vmem:[%s352 + $0x1c] sm:$0xf]
      %v451 = vld [vmem:[%s352 + $0x20] sm:$0xf]
      %v452 = vld [vmem:[%s352 + $0x24] sm:$0xf]
      %v453 = vld [vmem:[%s352 + $0x28] sm:$0xf]
      %v454 = vld [vmem:[%s352 + $0x2c] sm:$0xf]
      %v455 = vld [vmem:[%s352 + $0x30] sm:$0xf]
      %v456 = vld [vmem:[%s352 + $0x34] sm:$0xf]
      %v457 = vld [vmem:[%s352 + $0x38] sm:$0xf]
      %v458 = vld [vmem:[%s352 + $0x3c] sm:$0xf]
      %v459 = vld [vmem:[%s5] sm:$0xf]
      %v460 = vld [vmem:[%s5 + $0x4] sm:$0xf]
      %v477 = vunpack.c.l.b16 %v443
      %v478 = vunpack.c.l.b16 %v444
      %v479 = vunpack.c.l.b16 %v445
      %v480 = vunpack.c.l.b16 %v446
      %v481 = vunpack.c.l.b16 %v447
      %v482 = vunpack.c.l.b16 %v448
      %v483 = vunpack.c.l.b16 %v449
      %v484 = vunpack.c.l.b16 %v450
      %v485 = vunpack.c.l.b16 %v451
      %v486 = vunpack.c.l.b16 %v452
      %v487 = vunpack.c.l.b16 %v453
      %v488 = vunpack.c.l.b16 %v454
      %v489 = vunpack.c.l.b16 %v455
      %v490 = vunpack.c.l.b16 %v456
      %v491 = vunpack.c.l.b16 %v457
      %v492 = vunpack.c.l.b16 %v458
      %v493 = vpack.c.b16 %v478, %v477
      %v494 = vpack.c.b16 %v480, %v479
      %v495 = vpack.c.b16 %v482, %v481
      %v496 = vpack.c.b16 %v484, %v483
      %v497 = vpack.c.b16 %v486, %v485
      %v498 = vpack.c.b16 %v488, %v487
      %v499 = vpack.c.b16 %v490, %v489
      %v500 = vpack.c.b16 %v492, %v491
      %v503 = vunpack.c.l.b16 %v459
      %v504 = vunpack.c.l.b16 %v460
      %v505 = vpack.c.b16 %v504, %v503
      %vm507 = vcmask 130048
      %v509 = vsel %vm507, %v493, 0
      %v512 = vsel %vm507, %v494, 0
      %v515 = vsel %vm507, %v495, 0
      %v518 = vsel %vm507, %v496, 0
      %v521 = vsel %vm507, %v497, 0
      %v524 = vsel %vm507, %v498, 0
      %v527 = vsel %vm507, %v499, 0
      %v530 = vsel %vm507, %v500, 0
      %532 = vmatpush.bf16.msra.mxu0 0
      %533 = vmatpush.bf16.msra.mxu0 0
      %534 = vmatpush.bf16.msra.mxu0 0
      %535 = vmatpush.bf16.msra.mxu0 0
      %536 = vmatpush.bf16.msra.mxu0 0
      %537 = vmatpush.bf16.msra.mxu0 0
      %538 = vmatpush.bf16.msra.mxu0 0
      %539 = vmatpush.bf16.msra.mxu0 %v505
      %540 = vmatmul.bf16.gmra.mxu0 %v509
      %v541 = vpop.f32.mrf.mxu0
      %v542 = vadd.f32 0.0, %v541
      %v543 = vpop.f32.mrf.mxu0
      %v544 = vadd.f32 0.0, %v543
      %545 = vmatmul.bf16.gmra.mxu0 %v512
      %v546 = vpop.f32.mrf.mxu0
      %v547 = vadd.f32 0.0, %v546
      %v548 = vpop.f32.mrf.mxu0
      %v549 = vadd.f32 0.0, %v548
      %550 = vmatmul.bf16.gmra.mxu0 %v515
      %v551 = vpop.f32.mrf.mxu0
      %v552 = vadd.f32 0.0, %v551
      %v553 = vpop.f32.mrf.mxu0
      %v554 = vadd.f32 0.0, %v553
      %555 = vmatmul.bf16.gmra.mxu0 %v518
      %v556 = vpop.f32.mrf.mxu0
      %v557 = vadd.f32 0.0, %v556
      %v558 = vpop.f32.mrf.mxu0
      %v559 = vadd.f32 0.0, %v558
      %560 = vmatmul.bf16.gmra.mxu0 %v521
      %v561 = vpop.f32.mrf.mxu0
      %v562 = vadd.f32 0.0, %v561
      %v563 = vpop.f32.mrf.mxu0
      %v564 = vadd.f32 0.0, %v563
      %565 = vmatmul.bf16.gmra.mxu0 %v524
      %v566 = vpop.f32.mrf.mxu0
      %v567 = vadd.f32 0.0, %v566
      %v568 = vpop.f32.mrf.mxu0
      %v569 = vadd.f32 0.0, %v568
      %570 = vmatmul.bf16.gmra.mxu0 %v527
      %v571 = vpop.f32.mrf.mxu0
      %v572 = vadd.f32 0.0, %v571
      %v573 = vpop.f32.mrf.mxu0
      %v574 = vadd.f32 0.0, %v573
      %575 = vmatmul.bf16.gmra.mxu0 %v530
      %v576 = vpop.f32.mrf.mxu0
      %v577 = vadd.f32 0.0, %v576
      %v578 = vpop.f32.mrf.mxu0
      %v579 = vadd.f32 0.0, %v578
      %580 = vdwg.mxu0
      %v583 = vrot.slane %v439, 1
      %v584 = vrot.slane %v439, 2
      %v585 = vrot.slane %v439, 3
      %v586 = vrot.slane %v439, 4
      %v587 = vrot.slane %v439, 5
      %v588 = vrot.slane %v439, 6
      %v589 = vrot.slane %v439, 7
      %v590 = vrot.slane %v441, 1
      %v591 = vrot.slane %v441, 2
      %v592 = vrot.slane %v441, 3
      %v593 = vrot.slane %v441, 4
      %v594 = vrot.slane %v441, 5
      %v595 = vrot.slane %v441, 6
      %v596 = vrot.slane %v441, 7
      %v597 = vperm.slane %v439, 0
      %v598 = vperm.slane %v583, 0
      %v599 = vperm.slane %v584, 0
      %v600 = vperm.slane %v585, 0
      %v601 = vperm.slane %v586, 0
      %v602 = vperm.slane %v587, 0
      %v603 = vperm.slane %v588, 0
      %v604 = vperm.slane %v589, 0
      %v605 = vperm.slane %v441, 0
      %v606 = vperm.slane %v590, 0
      %v607 = vperm.slane %v591, 0
      %v608 = vperm.slane %v592, 0
      %v609 = vperm.slane %v593, 0
      %v610 = vperm.slane %v594, 0
      %v611 = vperm.slane %v595, 0
      %v612 = vperm.slane %v596, 0
      %v629 = vadd.f32 %v597, %v542
      %v630 = vadd.f32 %v598, %v544
      %v631 = vadd.f32 %v599, %v547
      %v632 = vadd.f32 %v600, %v549
      %v633 = vadd.f32 %v601, %v552
      %v634 = vadd.f32 %v602, %v554
      %v635 = vadd.f32 %v603, %v557
      %v636 = vadd.f32 %v604, %v559
      %v637 = vadd.f32 %v605, %v562
      %v638 = vadd.f32 %v606, %v564
      %v639 = vadd.f32 %v607, %v567
      %v640 = vadd.f32 %v608, %v569
      %v641 = vadd.f32 %v609, %v572
      %v642 = vadd.f32 %v610, %v574
      %v643 = vadd.f32 %v611, %v577
      %v644 = vadd.f32 %v612, %v579
      %v645 = vmax.f32 %v629, 0.0
      %v646 = vmax.f32 %v630, 0.0
      %v647 = vmax.f32 %v631, 0.0
      %v648 = vmax.f32 %v632, 0.0
      %v649 = vmax.f32 %v633, 0.0
      %v650 = vmax.f32 %v634, 0.0
      %v651 = vmax.f32 %v635, 0.0
      %v652 = vmax.f32 %v636, 0.0
      %v653 = vmax.f32 %v637, 0.0
      %v654 = vmax.f32 %v638, 0.0
      %v655 = vmax.f32 %v639, 0.0
      %v656 = vmax.f32 %v640, 0.0
      %v657 = vmax.f32 %v641, 0.0
      %v658 = vmax.f32 %v642, 0.0
      %v659 = vmax.f32 %v643, 0.0
      %v660 = vmax.f32 %v644, 0.0
      %v661 = vld [vmem:[%s7] sm:$0x1]
      %v662 = vunpack.c.l.bf16 %v661
      %v663 = vperm.slane %v662, 0
      %v664 = vmul.f32 %v645, %v663
      %v665 = vmul.f32 %v646, %v663
      %v666 = vmul.f32 %v647, %v663
      %v667 = vmul.f32 %v648, %v663
      %v668 = vmul.f32 %v649, %v663
      %v669 = vmul.f32 %v650, %v663
      %v670 = vmul.f32 %v651, %v663
      %v671 = vmul.f32 %v652, %v663
      %v672 = vmul.f32 %v653, %v663
      %v673 = vmul.f32 %v654, %v663
      %v674 = vmul.f32 %v655, %v663
      %v675 = vmul.f32 %v656, %v663
      %v676 = vmul.f32 %v657, %v663
      %v677 = vmul.f32 %v658, %v663
      %v678 = vmul.f32 %v659, %v663
      %v679 = vmul.f32 %v660, %v663
      %v680 = vsel %vm425, %v664, 0.0
      %681 = vadd.xlane.f32.xlu0 %v680
      %v682 = vpop.xlane.xlu0 %681
      %v683 = vsel %vm425, %v665, 0.0
      %684 = vadd.xlane.f32.xlu0 %v683
      %v685 = vpop.xlane.xlu0 %684
      %v686 = vsel %vm425, %v666, 0.0
      %687 = vadd.xlane.f32.xlu0 %v686
      %v688 = vpop.xlane.xlu0 %687
      %v689 = vsel %vm425, %v667, 0.0
      %690 = vadd.xlane.f32.xlu0 %v689
      %v691 = vpop.xlane.xlu0 %690
      %v692 = vsel %vm425, %v668, 0.0
      %693 = vadd.xlane.f32.xlu0 %v692
      %v694 = vpop.xlane.xlu0 %693
      %v695 = vsel %vm425, %v669, 0.0
      %696 = vadd.xlane.f32.xlu0 %v695
      %v697 = vpop.xlane.xlu0 %696
      %v698 = vsel %vm425, %v670, 0.0
      %699 = vadd.xlane.f32.xlu0 %v698
      %v700 = vpop.xlane.xlu0 %699
      %v701 = vsel %vm425, %v671, 0.0
      %702 = vadd.xlane.f32.xlu0 %v701
      %v703 = vpop.xlane.xlu0 %702
      %v704 = vsel %vm425, %v672, 0.0
      %705 = vadd.xlane.f32.xlu0 %v704
      %v706 = vpop.xlane.xlu0 %705
      %v707 = vsel %vm425, %v673, 0.0
      %708 = vadd.xlane.f32.xlu0 %v707
      %v709 = vpop.xlane.xlu0 %708
      %v710 = vsel %vm425, %v674, 0.0
      %711 = vadd.xlane.f32.xlu0 %v710
      %v712 = vpop.xlane.xlu0 %711
      %v713 = vsel %vm425, %v675, 0.0
      %714 = vadd.xlane.f32.xlu0 %v713
      %v715 = vpop.xlane.xlu0 %714
      %v716 = vsel %vm425, %v676, 0.0
      %717 = vadd.xlane.f32.xlu0 %v716
      %v718 = vpop.xlane.xlu0 %717
      %v719 = vsel %vm425, %v677, 0.0
      %720 = vadd.xlane.f32.xlu0 %v719
      %v721 = vpop.xlane.xlu0 %720
      %v722 = vsel %vm425, %v678, 0.0
      %723 = vadd.xlane.f32.xlu0 %v722
      %v724 = vpop.xlane.xlu0 %723
      %v725 = vsel %vm425, %v679, 0.0
      %726 = vadd.xlane.f32.xlu0 %v725
      %v727 = vpop.xlane.xlu0 %726
      %v728 = vld [vmem:[#allocation2] sm:$0x1]
      %v730 = vperm.slane %v728, 0
      %731 = vset.pattern.permute.xlu0 0
      %732 = vperm.xlu0 %731, %v730
      %v733 = vpop.permute.xlu0 %732
      %v735 = vadd.f32 %v682, %v733
      %v736 = vadd.f32 %v685, %v733
      %v737 = vadd.f32 %v688, %v733
      %v738 = vadd.f32 %v691, %v733
      %v739 = vadd.f32 %v694, %v733
      %v740 = vadd.f32 %v697, %v733
      %v741 = vadd.f32 %v700, %v733
      %v742 = vadd.f32 %v703, %v733
      %v743 = vadd.f32 %v706, %v733
      %v744 = vadd.f32 %v709, %v733
      %v745 = vadd.f32 %v712, %v733
      %v746 = vadd.f32 %v715, %v733
      %v747 = vadd.f32 %v718, %v733
      %v748 = vadd.f32 %v721, %v733
      %v749 = vadd.f32 %v724, %v733
      %v750 = vadd.f32 %v727, %v733
      %v767 = vlaneseq
      %v768 = vand.u32 %v767, 127
      %v769 = vperm.slane %v735, %v768
      %v770 = vperm.slane %v736, %v768
      %v771 = vperm.slane %v737, %v768
      %v772 = vperm.slane %v738, %v768
      %v773 = vperm.slane %v739, %v768
      %v774 = vperm.slane %v740, %v768
      %v775 = vperm.slane %v741, %v768
      %v776 = vperm.slane %v742, %v768
      %v777 = vperm.slane %v743, %v768
      %v778 = vperm.slane %v744, %v768
      %v779 = vperm.slane %v745, %v768
      %v780 = vperm.slane %v746, %v768
      %v781 = vperm.slane %v747, %v768
      %v782 = vperm.slane %v748, %v768
      %v783 = vperm.slane %v749, %v768
      %v784 = vperm.slane %v750, %v768
      %vm785 = vcmask 1041409
      %v786 = vsel %vm785, %v770, %v769
      %vm787 = vcmask 1042434
      %v788 = vsel %vm787, %v771, %v786
      %vm789 = vcmask 1043459
      %v790 = vsel %vm789, %v772, %v788
      %vm791 = vcmask 1044484
      %v792 = vsel %vm791, %v773, %v790
      %vm793 = vcmask 1045509
      %v794 = vsel %vm793, %v774, %v792
      %vm795 = vcmask 1046534
      %v796 = vsel %vm795, %v775, %v794
      %vm797 = vcmask 1047559
      %v798 = vsel %vm797, %v776, %v796
      %v799 = vsel %vm785, %v778, %v777
      %v800 = vsel %vm787, %v779, %v799
      %v801 = vsel %vm789, %v780, %v800
      %v802 = vsel %vm791, %v781, %v801
      %v803 = vsel %vm793, %v782, %v802
      %v804 = vsel %vm795, %v783, %v803
      %v805 = vsel %vm797, %v784, %v804
      %vm808 = vcmask 64512
      %809 = vst.msk [vmem:[%s358] sm:$0xff] %vm808, %v798
      %810 = vst.msk [vmem:[%s358 + $0x8] sm:$0xff] %vm808, %v805
      %s811 = smul.u32 2, %s22
      %p812 = scmp.lt.s32.totalorder %s811, 3
      %s813 = scalar_select %p812, %s811, 3
      %s814 = smul.addr %s813, 8
      %s815 = scalar_lea.vmem %s9, %s814
      // Predicated region
      $region57: #{tpu_custom_call.1} parent=55 // pred_check
        %p816 = pneg %p239
      $region58: #{tpu_custom_call.1} parent=55 // pred_check_branch
        %818 = sbr.rel (%p816) target = $region60
      $region59: #{tpu_custom_call.1} parent=55 // pred_region
        %s819 = smul.u32 2, %s22
      $region60: #{tpu_custom_call.1} parent=55 // pred_fallthru
        _
    $region56: #{tpu_custom_call.1} parent=5 // pred_fallthru
      _
    %p820 = scmp.le.s32.totalorder 2, %s17
    // Predicated region
    $region61: #{tpu_custom_call.1} parent=5 // pred_check
      %p821 = pneg %p820
    $region62: #{tpu_custom_call.1} parent=5 // pred_check_branch
      %823 = sbr.rel (%p821) target = $region64
    $region63: #{tpu_custom_call.1} parent=5 // pred_region
      %s824 = ssub.s32 %s17, 2
      // Predicated region
      $region65: #{tpu_custom_call.1} parent=63 // pred_check
        %p825 = pneg %p245
      $region66: #{tpu_custom_call.1} parent=63 // pred_check_branch
        %827 = sbr.rel (%p825) target = $region68
      $region67: #{tpu_custom_call.1} parent=63 // pred_region
        %s828 = smul.u32 2, %s23
        %p829 = scmp.lt.s32.totalorder %s828, 3
        %s830 = scalar_select %p829, %s828, 3
        %s831 = smul.addr %s830, 8
        %s832 = scalar_lea.vmem %s9, %s831
      $region68: #{tpu_custom_call.1} parent=63 // pred_fallthru
        _
    $region64: #{tpu_custom_call.1} parent=5 // pred_fallthru
      _
  $region6: #{tpu_custom_call.1} parent=0 // loop_footer
    %s21 = sadd.s32 1, %s17
  $region7: #{tpu_custom_call.1} parent=0 // loop_footer_branch
    %16 = sbr.rel target = $region3
  $region8: #{tpu_custom_call.1} parent=0 // loop_exit
    _

</llo_original>
